<compile_context>
chip_gen: v5e
topology: v5e:2x2
jax: 0.10.0
libtpu: 0.0.40
codegen_flags: <defaults>
</compile_context>

<pallas_src>
import functools

import jax
import jax.numpy as jnp
from jax.experimental import pallas as pl
from jax.experimental.pallas import tpu as pltpu


_SUB = 256  # preferred in-kernel compute sub-tile (rows)


def _round_up(n, m):
    return ((n + m - 1) // m) * m


def _mlp_kernel(x_ref, w1_ref, b1_ref, w2_ref, b2_ref, w3_ref, b3_ref, o_ref, *, sub):
    # Resident (tiny) weights / biases: read once per grid step.
    w1 = w1_ref[...]                     # (F,  H1) bf16
    b1 = b1_ref[...]                     # (1,  H1) f32
    w2 = w2_ref[...]                     # (H1, H2) bf16
    b2 = b2_ref[...]                     # (1,  H2) f32
    w3 = w3_ref[...]                     # (1,  H2) f32
    b3 = b3_ref[...]                     # (1,  1)  f32

    n_sub = x_ref.shape[0] // sub        # static

    def body(s, carry):
        r = pl.multiple_of(s * sub, sub)
        # f32 stream from HBM; cast to bf16 on the VPU right before the MXU.
        xs = x_ref[pl.ds(r, sub), :].astype(jnp.bfloat16)

        h1 = jnp.dot(xs, w1, preferred_element_type=jnp.float32)
        h1 = jnp.maximum(h1 + b1, 0.0)                       # (sub, H1) f32

        # Dropout(p=0.2): eval-mode identity.

        h2 = jnp.dot(h1.astype(jnp.bfloat16), w2, preferred_element_type=jnp.float32)
        h2 = jnp.maximum(h2 + b2, 0.0)                       # (sub, H2) f32

        # Final (H2 -> 1) layer on VPU/XLU: weight the rows and lane-reduce instead of
        # an N=1 MXU matmul; result emitted lane-major for unmasked, lane-dense stores.
        row = jnp.sum(h2 * w3, axis=-1).reshape(1, 1, sub) + b3.reshape(1, 1, 1)
        o_ref[:, :, pl.ds(r, sub)] = row.astype(o_ref.dtype)
        return carry

    jax.lax.fori_loop(0, n_sub, body, 0, unroll=True)


@functools.partial(jax.jit, static_argnames=("block_b",))
def intermediate_output_forward(x, w1, b1, w2, b2, w3, b3, *, block_b=2048):
    """x: [B, in_features] float32.

    w1: [in, in//2], w2: [in//2, in//4] (PyTorch weights pre-transposed),
    w3: [1, in//4] row (== afc3.weight as-is), biases broadcastable to [1, out].
    Returns [B, 1] float32.
    """
    B, F = x.shape
    H1 = w1.shape[1]
    H2 = w2.shape[1]

    # Sanitize the requested tile: multiple of 128 rows (lane-dense output + (8,128)
    # BlockSpec rule), capped so double-buffered f32 tiles stay far under VMEM (v7x: 64 MiB).
    block_b = min(8192, max(128, _round_up(int(block_b), 128)))

    # Batch tile: at most block_b, at least one 128-row tile; no wrapper-side padding —
    # the ragged last block over-reads and its rows are sliced off below.
    bb = min(block_b, _round_up(max(B, 1), 128))
    # v7x megacore: keep >= 2 grid steps once there is enough work so the "parallel"
    # batch axis can shard across both TensorCores (no effect on v5e/v6e).
    if B >= 2 * 128:
        bb = min(bb, _round_up(pl.cdiv(B, 2), 128))
    n_blocks = pl.cdiv(B, bb)

    # In-kernel compute sub-tile (bounds vreg live ranges at large bb).
    sub = _SUB if bb % _SUB == 0 else 128

    # bf16 MXU operands for W1/W2 (resident, ~20 KiB -> no bandwidth significance);
    # biases and the final 32->1 row stay f32.
    w1_bf = w1.astype(jnp.bfloat16)
    w2_bf = w2.astype(jnp.bfloat16)
    b1_f = b1.reshape(1, H1).astype(jnp.float32)
    b2_f = b2.reshape(1, H2).astype(jnp.float32)
    w3_row = w3.reshape(1, H2).astype(jnp.float32)
    b3_f = b3.reshape(1, 1).astype(jnp.float32)

    out3 = pl.pallas_call(
        functools.partial(_mlp_kernel, sub=sub),
        out_shape=jax.ShapeDtypeStruct((n_blocks, 1, bb), jnp.float32),
        grid_spec=pltpu.PrefetchScalarGridSpec(
            num_scalar_prefetch=0,
            grid=(n_blocks,),
            in_specs=[
                # batch-tiled f32 activation (the only array that actually streams)
                pl.BlockSpec((bb, F), lambda i: (i, 0)),
                # weights / biases: full arrays, VMEM-resident across grid steps
                pl.BlockSpec((F, H1), lambda i: (0, 0)),
                pl.BlockSpec((1, H1), lambda i: (0, 0)),
                pl.BlockSpec((H1, H2), lambda i: (0, 0)),
                pl.BlockSpec((1, H2), lambda i: (0, 0)),
                pl.BlockSpec((1, H2), lambda i: (0, 0)),
                pl.BlockSpec((1, 1), lambda i: (0, 0)),
            ],
            # lane-dense output slab: one (1, 1, bb) row per grid step
            out_specs=pl.BlockSpec((1, 1, bb), lambda i: (i, 0, 0)),
        ),
        compiler_params=pltpu.CompilerParams(
            dimension_semantics=("parallel",),
        ),
    )(x, w1_bf, b1_f, w2_bf, b2_f, w3_row, b3_f)

    # (n_blocks, 1, bb) -> (B, 1); rows past B (ragged last block) are dropped here.
    return out3.reshape(-1, 1)[:B]


def init_params(key, in_features=128):
    """Deterministic PyTorch-style (uniform +-1/sqrt(fan_in)) init.

    Returns w1,w2 as [in, out]; w3 as a [1, in//4] row; biases as [1, out]."""
    h1, h2 = in_features // 2, in_features // 4
    ks = jax.random.split(key, 6)

    def lin(kw, kb, fan_in, fan_out):
        bound = 1.0 / (fan_in ** 0.5)
        w = jax.random.uniform(kw, (fan_in, fan_out), jnp.float32, -bound, bound)
        b = jax.random.uniform(kb, (1, fan_out), jnp.float32, -bound, bound)
        return w, b

    w1, b1 = lin(ks[0], ks[1], in_features, h1)
    w2, b2 = lin(ks[2], ks[3], h1, h2)
    w3c, b3 = lin(ks[4], ks[5], h2, 1)
    w3 = w3c.reshape(1, h2)
    return w1, b1, w2, b2, w3, b3


if __name__ == "__main__":
    key = jax.random.PRNGKey(0)
    k_x, k_p = jax.random.split(key)

    in_features = 128
    batch = 16
    x = jax.random.normal(k_x, (batch, in_features), dtype=jnp.float32)
    params = init_params(k_p, in_features)

    out = intermediate_output_forward(x, *params)
    out = jax.block_until_ready(out)
    assert out.shape == (batch, 1), out.shape

    w1, b1, w2, b2, w3, b3 = params

    # Reference 1: same mixed precision as the kernel (bf16 matmuls, f32 accumulate).
    h1 = jnp.maximum(jnp.dot(x.astype(jnp.bfloat16), w1.astype(jnp.bfloat16),
                             preferred_element_type=jnp.float32) + b1, 0.0)
    h2 = jnp.maximum(jnp.dot(h1.astype(jnp.bfloat16), w2.astype(jnp.bfloat16),
                             preferred_element_type=jnp.float32) + b2, 0.0)
    ref_mixed = jnp.sum(h2 * w3, axis=-1, keepdims=True) + b3
    assert jnp.allclose(out, ref_mixed, atol=2e-3, rtol=2e-3), \
        float(jnp.max(jnp.abs(out - ref_mixed)))

    # Reference 2 (loose): full-f32 PyTorch-equivalent forward (bf16 matmul error).
    h1f = jnp.maximum(x @ w1 + b1, 0.0)
    h2f = jnp.maximum(h1f @ w2 + b2, 0.0)
    ref_f32 = jnp.sum(h2f * w3, axis=-1, keepdims=True) + b3
    assert jnp.allclose(out, ref_f32, atol=1e-1, rtol=1e-1), \
        float(jnp.max(jnp.abs(out - ref_f32)))

    print("KERNEL_OK")
</pallas_src>

<mosaic_0001>
module attributes {stable_mosaic.version = 11 : i64} {
  func.func @_mlp_kernel(%arg0: i32, %arg1: memref<128x128xf32, #tpu.memory_space<vmem>>, %arg2: memref<128x64xbf16, #tpu.memory_space<vmem>>, %arg3: memref<1x64xf32, #tpu.memory_space<vmem>>, %arg4: memref<64x32xbf16, #tpu.memory_space<vmem>>, %arg5: memref<1x32xf32, #tpu.memory_space<vmem>>, %arg6: memref<1x32xf32, #tpu.memory_space<vmem>>, %arg7: memref<1x1xf32, #tpu.memory_space<vmem>>, %arg8: memref<1x1x128xf32, #tpu.memory_space<vmem>>) attributes {dimension_semantics = [#tpu.dimension_semantics<parallel>], iteration_bounds = array<i64: 1>, scalar_prefetch = 0 : i64, scratch_operands = 0 : i64, tpu.core_type = #tpu.core_type<tc>, window_params = [{transform_indices = @transform_0, window_bounds = array<i64: 128, 128>}, {pipeline_mode = #tpu.pipeline_mode<synchronous>, transform_indices = @transform_1, window_bounds = array<i64: 128, 64>}, {pipeline_mode = #tpu.pipeline_mode<synchronous>, transform_indices = @transform_2, window_bounds = array<i64: 1, 64>}, {pipeline_mode = #tpu.pipeline_mode<synchronous>, transform_indices = @transform_3, window_bounds = array<i64: 64, 32>}, {pipeline_mode = #tpu.pipeline_mode<synchronous>, transform_indices = @transform_4, window_bounds = array<i64: 1, 32>}, {pipeline_mode = #tpu.pipeline_mode<synchronous>, transform_indices = @transform_5, window_bounds = array<i64: 1, 32>}, {pipeline_mode = #tpu.pipeline_mode<synchronous>, transform_indices = @transform_6, window_bounds = array<i64: 1, 1>}, {transform_indices = @transform_7, window_bounds = array<i64: 1, 1, 128>}]} {
    %c0 = arith.constant 0 : index
    %c0_0 = arith.constant 0 : index
    %0 = vector.load %arg2[%c0, %c0_0] : memref<128x64xbf16, #tpu.memory_space<vmem>>, vector<128x64xbf16>
    %c0_1 = arith.constant 0 : index
    %c0_2 = arith.constant 0 : index
    %1 = vector.load %arg3[%c0_1, %c0_2] : memref<1x64xf32, #tpu.memory_space<vmem>>, vector<1x64xf32>
    %c0_3 = arith.constant 0 : index
    %c0_4 = arith.constant 0 : index
    %2 = vector.load %arg4[%c0_3, %c0_4] : memref<64x32xbf16, #tpu.memory_space<vmem>>, vector<64x32xbf16>
    %c0_5 = arith.constant 0 : index
    %c0_6 = arith.constant 0 : index
    %3 = vector.load %arg5[%c0_5, %c0_6] : memref<1x32xf32, #tpu.memory_space<vmem>>, vector<1x32xf32>
    %c0_7 = arith.constant 0 : index
    %c0_8 = arith.constant 0 : index
    %4 = vector.load %arg6[%c0_7, %c0_8] : memref<1x32xf32, #tpu.memory_space<vmem>>, vector<1x32xf32>
    %c0_9 = arith.constant 0 : index
    %c0_10 = arith.constant 0 : index
    %5 = vector.load %arg7[%c0_9, %c0_10] : memref<1x1xf32, #tpu.memory_space<vmem>>, vector<1x1xf32>
    %c0_i32 = arith.constant 0 : i32
    %c128_i32 = arith.constant 128 : i32
    %6 = arith.muli %c0_i32, %c128_i32 : i32
    %7 = tpu.assume_multiple %6, 128 : i32
    %8 = arith.index_cast %7 : i32 to index
    %c0_11 = arith.constant 0 : index
    %9 = vector.load %arg1[%8, %c0_11] : memref<128x128xf32, #tpu.memory_space<vmem>>, vector<128x128xf32>
    %10 = arith.truncf %9 : vector<128x128xf32> to vector<128x128xbf16>
    %cst = arith.constant dense<0.000000e+00> : vector<128x64xf32>
    %11 = tpu.matmul %10, %0, %cst {dimension_numbers = #tpu.dot_dimension_numbers<[1], [0], [0], [1], [0, 0, 1, 1], [], []>} : vector<128x128xbf16>, vector<128x64xbf16>, vector<128x64xf32> -> vector<128x64xf32>
    %12 = vector.broadcast %1 : vector<1x64xf32> to vector<128x64xf32>
    %13 = arith.addf %11, %12 : vector<128x64xf32>
    %cst_12 = arith.constant 0.000000e+00 : f32
    %14 = vector.broadcast %cst_12 : f32 to vector<128x64xf32>
    %15 = arith.maximumf %13, %14 : vector<128x64xf32>
    %16 = arith.truncf %15 : vector<128x64xf32> to vector<128x64xbf16>
    %cst_13 = arith.constant dense<0.000000e+00> : vector<128x32xf32>
    %17 = tpu.matmul %16, %2, %cst_13 {dimension_numbers = #tpu.dot_dimension_numbers<[1], [0], [0], [1], [0, 0, 1, 1], [], []>} : vector<128x64xbf16>, vector<64x32xbf16>, vector<128x32xf32> -> vector<128x32xf32>
    %18 = vector.broadcast %3 : vector<1x32xf32> to vector<128x32xf32>
    %19 = arith.addf %17, %18 : vector<128x32xf32>
    %cst_14 = arith.constant 0.000000e+00 : f32
    %20 = vector.broadcast %cst_14 : f32 to vector<128x32xf32>
    %21 = arith.maximumf %19, %20 : vector<128x32xf32>
    %22 = vector.broadcast %4 : vector<1x32xf32> to vector<128x32xf32>
    %23 = arith.mulf %21, %22 : vector<128x32xf32>
    %cst_15 = arith.constant dense<0.000000e+00> : vector<128xf32>
    %24 = vector.multi_reduction <add>, %23, %cst_15 [1] : vector<128x32xf32> to vector<128xf32>
    %25 = vector.shape_cast %24 : vector<128xf32> to vector<1x1x128xf32>
    %26 = vector.shape_cast %5 : vector<1x1xf32> to vector<1x1x1xf32>
    %27 = vector.broadcast %26 : vector<1x1x1xf32> to vector<1x1x128xf32>
    %28 = arith.addf %25, %27 : vector<1x1x128xf32>
    %c0_16 = arith.constant 0 : index
    %c0_17 = arith.constant 0 : index
    %29 = arith.index_cast %7 : i32 to index
    %30 = vector.load %arg8[%c0_16, %c0_17, %29] : memref<1x1x128xf32, #tpu.memory_space<vmem>>, vector<1x1x128xf32>
    tpu.vector_store %arg8[%c0_16, %c0_17, %29], %28 {strides = array<i32>} : memref<1x1x128xf32, #tpu.memory_space<vmem>>, vector<1x1x128xf32>,
    %c1_i32 = arith.constant 1 : i32
    return
  }
  func.func @transform_0(%arg0: i32) -> (i32, i32) {
    %c0_i32 = arith.constant 0 : i32
    %c0_i32_0 = arith.constant 0 : i32
    return %arg0, %c0_i32 : i32, i32
  }
  func.func @transform_1(%arg0: i32) -> (i32, i32) {
    %c0_i32 = arith.constant 0 : i32
    %c0_i32_0 = arith.constant 0 : i32
    %c0_i32_1 = arith.constant 0 : i32
    return %c0_i32, %c0_i32_0 : i32, i32
  }
  func.func @transform_2(%arg0: i32) -> (i32, i32) {
    %c0_i32 = arith.constant 0 : i32
    %c0_i32_0 = arith.constant 0 : i32
    %c0_i32_1 = arith.constant 0 : i32
    return %c0_i32, %c0_i32_0 : i32, i32
  }
  func.func @transform_3(%arg0: i32) -> (i32, i32) {
    %c0_i32 = arith.constant 0 : i32
    %c0_i32_0 = arith.constant 0 : i32
    %c0_i32_1 = arith.constant 0 : i32
    return %c0_i32, %c0_i32_0 : i32, i32
  }
  func.func @transform_4(%arg0: i32) -> (i32, i32) {
    %c0_i32 = arith.constant 0 : i32
    %c0_i32_0 = arith.constant 0 : i32
    %c0_i32_1 = arith.constant 0 : i32
    return %c0_i32, %c0_i32_0 : i32, i32
  }
  func.func @transform_5(%arg0: i32) -> (i32, i32) {
    %c0_i32 = arith.constant 0 : i32
    %c0_i32_0 = arith.constant 0 : i32
    %c0_i32_1 = arith.constant 0 : i32
    return %c0_i32, %c0_i32_0 : i32, i32
  }
  func.func @transform_6(%arg0: i32) -> (i32, i32) {
    %c0_i32 = arith.constant 0 : i32
    %c0_i32_0 = arith.constant 0 : i32
    %c0_i32_1 = arith.constant 0 : i32
    return %c0_i32, %c0_i32_0 : i32, i32
  }
  func.func @transform_7(%arg0: i32) -> (i32, i32, i32) {
    %c0_i32 = arith.constant 0 : i32
    %c0_i32_0 = arith.constant 0 : i32
    %c0_i32_1 = arith.constant 0 : i32
    return %arg0, %c0_i32, %c0_i32_0 : i32, i32, i32
  }
}

</mosaic_0001>

<llo_original>
// kernel: intermediate_output_forward.1
$region0: #{intermediate_output_forward.1}
  #allocation0 [shape = 'u32[]', space=smem, size = 0x4, offset = 0x4, fixed_abs, tag = 'smem constant byte address 0x4 - core index']
  #allocation1 [shape = 'u32[72,128]{1,0:T(1,128)}', space=vmem, size = 0x9000, scoped, tag = 'internal scratch']
  #allocation2 [shape = 'f32[1,1]{1,0:T(1,128)S(1)}', space=vmem, size = 0x200, scoped, tag = 'scoped memory for intermediate_output_forward.1']
  %s0 = inlined_call_operand.vmem [shape: f32[16,128], index: 0, kind: input, shape index: {}]
  %s1 = inlined_call_operand.vmem [shape: bf16[128,64], index: 1, kind: input, shape index: {}]
  %s2 = inlined_call_operand.vmem [shape: f32[1,64], index: 2, kind: input, shape index: {}]
  %s3 = inlined_call_operand.vmem [shape: bf16[64,32], index: 3, kind: input, shape index: {}]
  %s4 = inlined_call_operand.vmem [shape: f32[1,32], index: 4, kind: input, shape index: {}]
  %s5 = inlined_call_operand.vmem [shape: f32[1,32], index: 5, kind: input, shape index: {}]
  %s6 = inlined_call_operand.<no memory space> [shape: f32[1,1], index: 6, kind: input, shape index: {}]
  %s7 = inlined_call_operand.vmem [shape: f32[1,1,128], index: 7, kind: output, shape index: {}]
  %s8 = sld [smem:[#allocation0]]
  $region38: #{intermediate_output_forward.1} parent=0
    _
  %s10 = ssub.s32 1, %s8
  %s11 = scalar_select 0, %s10, %s8
  %v12 = vstv %s6
  %13 = vst [vmem:[#allocation2] sm:$0x1] %v12
  // Predicated region
  $region2: #{intermediate_output_forward.1} parent=0 // pred_check
    _
  $region3: #{intermediate_output_forward.1} parent=0 // pred_check_branch
    %15 = sbr.rel (0) target = $region5
  $region4: #{intermediate_output_forward.1} parent=0 // pred_region
    _
  $region5: #{intermediate_output_forward.1} parent=0 // pred_fallthru
    _
  // Predicated region
  $region6: #{intermediate_output_forward.1} parent=0 // pred_check
    _
  $region7: #{intermediate_output_forward.1} parent=0 // pred_check_branch
    %17 = sbr.rel (0) target = $region9
  $region8: #{intermediate_output_forward.1} parent=0 // pred_region
    _
  $region9: #{intermediate_output_forward.1} parent=0 // pred_fallthru
    _
  // Predicated region
  $region10: #{intermediate_output_forward.1} parent=0 // pred_check
    _
  $region11: #{intermediate_output_forward.1} parent=0 // pred_check_branch
    %19 = sbr.rel (0) target = $region13
  $region12: #{intermediate_output_forward.1} parent=0 // pred_region
    _
  $region13: #{intermediate_output_forward.1} parent=0 // pred_fallthru
    _
  // Predicated region
  $region14: #{intermediate_output_forward.1} parent=0 // pred_check
    _
  $region15: #{intermediate_output_forward.1} parent=0 // pred_check_branch
    %21 = sbr.rel (0) target = $region17
  $region16: #{intermediate_output_forward.1} parent=0 // pred_region
    _
  $region17: #{intermediate_output_forward.1} parent=0 // pred_fallthru
    _
  // Predicated region
  $region18: #{intermediate_output_forward.1} parent=0 // pred_check
    _
  $region19: #{intermediate_output_forward.1} parent=0 // pred_check_branch
    %23 = sbr.rel (0) target = $region21
  $region20: #{intermediate_output_forward.1} parent=0 // pred_region
    _
  $region21: #{intermediate_output_forward.1} parent=0 // pred_fallthru
    _
  // Predicated region
  $region22: #{intermediate_output_forward.1} parent=0 // pred_check
    _
  $region23: #{intermediate_output_forward.1} parent=0 // pred_check_branch
    %25 = sbr.rel (0) target = $region25
  $region24: #{intermediate_output_forward.1} parent=0 // pred_region
    _
  $region25: #{intermediate_output_forward.1} parent=0 // pred_fallthru
    _
  // Predicated region
  $region26: #{intermediate_output_forward.1} parent=0 // pred_check
    _
  $region27: #{intermediate_output_forward.1} parent=0 // pred_check_branch
    %27 = sbr.rel (0) target = $region29
  $region28: #{intermediate_output_forward.1} parent=0 // pred_region
    _
  $region29: #{intermediate_output_forward.1} parent=0 // pred_fallthru
    _
  %v29 = vld [vmem:[%s1] sm:$0xf]
  %v30 = vld [vmem:[%s1 + $0x4] sm:$0xf]
  %v31 = vld [vmem:[%s1 + $0x8] sm:$0xf]
  %v32 = vld [vmem:[%s1 + $0xc] sm:$0xf]
  %v33 = vld [vmem:[%s1 + $0x10] sm:$0xf]
  %v34 = vld [vmem:[%s1 + $0x14] sm:$0xf]
  %v35 = vld [vmem:[%s1 + $0x18] sm:$0xf]
  %v36 = vld [vmem:[%s1 + $0x1c] sm:$0xf]
  %v37 = vld [vmem:[%s1 + $0x20] sm:$0xf]
  %v38 = vld [vmem:[%s1 + $0x24] sm:$0xf]
  %v39 = vld [vmem:[%s1 + $0x28] sm:$0xf]
  %v40 = vld [vmem:[%s1 + $0x2c] sm:$0xf]
  %v41 = vld [vmem:[%s1 + $0x30] sm:$0xf]
  %v42 = vld [vmem:[%s1 + $0x34] sm:$0xf]
  %v43 = vld [vmem:[%s1 + $0x38] sm:$0xf]
  %v44 = vld [vmem:[%s1 + $0x3c] sm:$0xf]
  %v45 = vld [vmem:[%s2] sm:$0x1]
  %v46 = vld [vmem:[%s3] sm:$0xf]
  %v47 = vld [vmem:[%s3 + $0x4] sm:$0xf]
  %v48 = vld [vmem:[%s3 + $0x8] sm:$0xf]
  %v49 = vld [vmem:[%s3 + $0xc] sm:$0xf]
  %v50 = vld [vmem:[%s3 + $0x10] sm:$0xf]
  %v51 = vld [vmem:[%s3 + $0x14] sm:$0xf]
  %v52 = vld [vmem:[%s3 + $0x18] sm:$0xf]
  %v53 = vld [vmem:[%s3 + $0x1c] sm:$0xf]
  %v54 = vld [vmem:[%s4] sm:$0x1]
  %v55 = vld [vmem:[%s5] sm:$0x1]
  %v56 = vld [vmem:[#allocation2] sm:$0x1]
  %v57 = vld [vmem:[%s0] sm:$0xff]
  %v58 = vld [vmem:[%s0 + $0x8] sm:$0xff]
  %v59 = vld [vmem:[%s0 + $0x10] sm:$0xff]
  %v60 = vld [vmem:[%s0 + $0x18] sm:$0xff]
  %v61 = vld [vmem:[%s0 + $0x20] sm:$0xff]
  %v62 = vld [vmem:[%s0 + $0x28] sm:$0xff]
  %v63 = vld [vmem:[%s0 + $0x30] sm:$0xff]
  %v64 = vld [vmem:[%s0 + $0x38] sm:$0xff]
  %v65 = vld [vmem:[%s0 + $0x40] sm:$0xff]
  %v66 = vld [vmem:[%s0 + $0x48] sm:$0xff]
  %v67 = vld [vmem:[%s0 + $0x50] sm:$0xff]
  %v68 = vld [vmem:[%s0 + $0x58] sm:$0xff]
  %v69 = vld [vmem:[%s0 + $0x60] sm:$0xff]
  %v70 = vld [vmem:[%s0 + $0x68] sm:$0xff]
  %v71 = vld [vmem:[%s0 + $0x70] sm:$0xff]
  %v72 = vld [vmem:[%s0 + $0x78] sm:$0xff]
  %v73 = vpack.c.bf16 %v58, %v57
  %v74 = vpack.c.bf16 %v60, %v59
  %v75 = vpack.c.bf16 %v62, %v61
  %v76 = vpack.c.bf16 %v64, %v63
  %v77 = vpack.c.bf16 %v66, %v65
  %v78 = vpack.c.bf16 %v68, %v67
  %v79 = vpack.c.bf16 %v70, %v69
  %v80 = vpack.c.bf16 %v72, %v71
  %v82 = vperm.slane %v45, 0
  %v100 = vunpack.c.l.b16 %v29
  %v101 = vunpack.c.l.b16 %v30
  %v102 = vunpack.c.l.b16 %v31
  %v103 = vunpack.c.l.b16 %v32
  %v104 = vunpack.c.l.b16 %v33
  %v105 = vunpack.c.l.b16 %v34
  %v106 = vunpack.c.l.b16 %v35
  %v107 = vunpack.c.l.b16 %v36
  %v108 = vunpack.c.l.b16 %v37
  %v109 = vunpack.c.l.b16 %v38
  %v110 = vunpack.c.l.b16 %v39
  %v111 = vunpack.c.l.b16 %v40
  %v112 = vunpack.c.l.b16 %v41
  %v113 = vunpack.c.l.b16 %v42
  %v114 = vunpack.c.l.b16 %v43
  %v115 = vunpack.c.l.b16 %v44
  %v116 = vpack.c.b16 %v101, %v100
  %v117 = vpack.c.b16 %v103, %v102
  %v118 = vpack.c.b16 %v105, %v104
  %v119 = vpack.c.b16 %v107, %v106
  %v120 = vpack.c.b16 %v109, %v108
  %v121 = vpack.c.b16 %v111, %v110
  %v122 = vpack.c.b16 %v113, %v112
  %v123 = vpack.c.b16 %v115, %v114
  %132 = vmatpush.bf16.msra.mxu0 %v123
  %133 = vmatpush.bf16.msra.mxu0 %v122
  %134 = vmatpush.bf16.msra.mxu0 %v121
  %135 = vmatpush.bf16.msra.mxu0 %v120
  %136 = vmatpush.bf16.msra.mxu0 %v119
  %137 = vmatpush.bf16.msra.mxu0 %v118
  %138 = vmatpush.bf16.msra.mxu0 %v117
  %139 = vmatpush.bf16.msra.mxu0 %v116
  %140 = vmatmul.bf16.gmra.mxu0 %v73
  %v141 = vpop.f32.mrf.mxu0
  %v142 = vadd.f32 %v82, %v141
  %v143 = vpop.f32.mrf.mxu0
  %v144 = vadd.f32 %v82, %v143
  %145 = vmatmul.bf16.gmra.mxu0 %v74
  %v146 = vpop.f32.mrf.mxu0
  %v147 = vadd.f32 %v82, %v146
  %v148 = vpop.f32.mrf.mxu0
  %v149 = vadd.f32 %v82, %v148
  %150 = vmatmul.bf16.gmra.mxu0 %v75
  %v151 = vpop.f32.mrf.mxu0
  %v152 = vadd.f32 %v82, %v151
  %v153 = vpop.f32.mrf.mxu0
  %v154 = vadd.f32 %v82, %v153
  %155 = vmatmul.bf16.gmra.mxu0 %v76
  %v156 = vpop.f32.mrf.mxu0
  %v157 = vadd.f32 %v82, %v156
  %v158 = vpop.f32.mrf.mxu0
  %v159 = vadd.f32 %v82, %v158
  %160 = vmatmul.bf16.gmra.mxu0 %v77
  %v161 = vpop.f32.mrf.mxu0
  %v162 = vadd.f32 %v82, %v161
  %v163 = vpop.f32.mrf.mxu0
  %v164 = vadd.f32 %v82, %v163
  %165 = vmatmul.bf16.gmra.mxu0 %v78
  %v166 = vpop.f32.mrf.mxu0
  %v167 = vadd.f32 %v82, %v166
  %v168 = vpop.f32.mrf.mxu0
  %v169 = vadd.f32 %v82, %v168
  %170 = vmatmul.bf16.gmra.mxu0 %v79
  %v171 = vpop.f32.mrf.mxu0
  %v172 = vadd.f32 %v82, %v171
  %v173 = vpop.f32.mrf.mxu0
  %v174 = vadd.f32 %v82, %v173
  %175 = vmatmul.bf16.gmra.mxu0 %v80
  %v176 = vpop.f32.mrf.mxu0
  %v177 = vadd.f32 %v82, %v176
  %v178 = vpop.f32.mrf.mxu0
  %v179 = vadd.f32 %v82, %v178
  %180 = vdwg.mxu0
  %v181 = vmax.f32 %v142, 0.0
  %v182 = vmax.f32 %v144, 0.0
  %v183 = vmax.f32 %v147, 0.0
  %v184 = vmax.f32 %v149, 0.0
  %v185 = vmax.f32 %v152, 0.0
  %v186 = vmax.f32 %v154, 0.0
  %v187 = vmax.f32 %v157, 0.0
  %v188 = vmax.f32 %v159, 0.0
  %v189 = vmax.f32 %v162, 0.0
  %v190 = vmax.f32 %v164, 0.0
  %v191 = vmax.f32 %v167, 0.0
  %v192 = vmax.f32 %v169, 0.0
  %v193 = vmax.f32 %v172, 0.0
  %v194 = vmax.f32 %v174, 0.0
  %v195 = vmax.f32 %v177, 0.0
  %v196 = vmax.f32 %v179, 0.0
  %v197 = vpack.c.bf16 %v182, %v181
  %v198 = vpack.c.bf16 %v184, %v183
  %v199 = vpack.c.bf16 %v186, %v185
  %v200 = vpack.c.bf16 %v188, %v187
  %v201 = vpack.c.bf16 %v190, %v189
  %v202 = vpack.c.bf16 %v192, %v191
  %v203 = vpack.c.bf16 %v194, %v193
  %v204 = vpack.c.bf16 %v196, %v195
  %v206 = vperm.slane %v54, 0
  %v216 = vunpack.c.l.b16 %v46
  %v217 = vunpack.c.l.b16 %v47
  %v218 = vunpack.c.l.b16 %v48
  %v219 = vunpack.c.l.b16 %v49
  %v220 = vunpack.c.l.b16 %v50
  %v221 = vunpack.c.l.b16 %v51
  %v222 = vunpack.c.l.b16 %v52
  %v223 = vunpack.c.l.b16 %v53
  %v224 = vpack.c.b16 %v217, %v216
  %v225 = vpack.c.b16 %v219, %v218
  %v226 = vpack.c.b16 %v221, %v220
  %v227 = vpack.c.b16 %v223, %v222
  %vm232 = vcmask 523264
  %v234 = vsel %vm232, %v197, 0
  %v237 = vsel %vm232, %v198, 0
  %v240 = vsel %vm232, %v199, 0
  %v243 = vsel %vm232, %v200, 0
  %v246 = vsel %vm232, %v201, 0
  %v249 = vsel %vm232, %v202, 0
  %v252 = vsel %vm232, %v203, 0
  %v255 = vsel %vm232, %v204, 0
  %257 = vmatpush.bf16.msra.mxu0 0
  %258 = vmatpush.bf16.msra.mxu0 0
  %259 = vmatpush.bf16.msra.mxu0 0
  %260 = vmatpush.bf16.msra.mxu0 0
  %261 = vmatpush.bf16.msra.mxu0 %v227
  %262 = vmatpush.bf16.msra.mxu0 %v226
  %263 = vmatpush.bf16.msra.mxu0 %v225
  %264 = vmatpush.bf16.msra.mxu0 %v224
  %265 = vmatmul.bf16.gmra.mxu0 %v234
  %v266 = vpop.f32.mrf.mxu0
  %v267 = vadd.f32 %v206, %v266
  %v268 = vpop.f32.mrf.mxu0
  %v269 = vadd.f32 %v206, %v268
  %270 = vmatmul.bf16.gmra.mxu0 %v237
  %v271 = vpop.f32.mrf.mxu0
  %v272 = vadd.f32 %v206, %v271
  %v273 = vpop.f32.mrf.mxu0
  %v274 = vadd.f32 %v206, %v273
  %275 = vmatmul.bf16.gmra.mxu0 %v240
  %v276 = vpop.f32.mrf.mxu0
  %v277 = vadd.f32 %v206, %v276
  %v278 = vpop.f32.mrf.mxu0
  %v279 = vadd.f32 %v206, %v278
  %280 = vmatmul.bf16.gmra.mxu0 %v243
  %v281 = vpop.f32.mrf.mxu0
  %v282 = vadd.f32 %v206, %v281
  %v283 = vpop.f32.mrf.mxu0
  %v284 = vadd.f32 %v206, %v283
  %285 = vmatmul.bf16.gmra.mxu0 %v246
  %v286 = vpop.f32.mrf.mxu0
  %v287 = vadd.f32 %v206, %v286
  %v288 = vpop.f32.mrf.mxu0
  %v289 = vadd.f32 %v206, %v288
  %290 = vmatmul.bf16.gmra.mxu0 %v249
  %v291 = vpop.f32.mrf.mxu0
  %v292 = vadd.f32 %v206, %v291
  %v293 = vpop.f32.mrf.mxu0
  %v294 = vadd.f32 %v206, %v293
  %295 = vmatmul.bf16.gmra.mxu0 %v252
  %v296 = vpop.f32.mrf.mxu0
  %v297 = vadd.f32 %v206, %v296
  %v298 = vpop.f32.mrf.mxu0
  %v299 = vadd.f32 %v206, %v298
  %300 = vmatmul.bf16.gmra.mxu0 %v255
  %v301 = vpop.f32.mrf.mxu0
  %v302 = vadd.f32 %v206, %v301
  %v303 = vpop.f32.mrf.mxu0
  %v304 = vadd.f32 %v206, %v303
  %305 = vdwg.mxu0
  %v306 = vmax.f32 %v267, 0.0
  %v307 = vmax.f32 %v269, 0.0
  %v308 = vmax.f32 %v272, 0.0
  %v309 = vmax.f32 %v274, 0.0
  %v310 = vmax.f32 %v277, 0.0
  %v311 = vmax.f32 %v279, 0.0
  %v312 = vmax.f32 %v282, 0.0
  %v313 = vmax.f32 %v284, 0.0
  %v314 = vmax.f32 %v287, 0.0
  %v315 = vmax.f32 %v289, 0.0
  %v316 = vmax.f32 %v292, 0.0
  %v317 = vmax.f32 %v294, 0.0
  %v318 = vmax.f32 %v297, 0.0
  %v319 = vmax.f32 %v299, 0.0
  %v320 = vmax.f32 %v302, 0.0
  %v321 = vmax.f32 %v304, 0.0
  %v323 = vperm.slane %v55, 0
  %v325 = vmul.f32 %v306, %v323
  %v326 = vmul.f32 %v307, %v323
  %v327 = vmul.f32 %v308, %v323
  %v328 = vmul.f32 %v309, %v323
  %v329 = vmul.f32 %v310, %v323
  %v330 = vmul.f32 %v311, %v323
  %v331 = vmul.f32 %v312, %v323
  %v332 = vmul.f32 %v313, %v323
  %v333 = vmul.f32 %v314, %v323
  %v334 = vmul.f32 %v315, %v323
  %v335 = vmul.f32 %v316, %v323
  %v336 = vmul.f32 %v317, %v323
  %v337 = vmul.f32 %v318, %v323
  %v338 = vmul.f32 %v319, %v323
  %v339 = vmul.f32 %v320, %v323
  %v340 = vmul.f32 %v321, %v323
  %vm341 = vcmask 261120
  %v342 = vsel %vm341, %v325, 0.0
  %343 = vadd.xlane.f32.xlu0 %v342
  %v344 = vpop.xlane.xlu0 %343
  %v345 = vsel %vm341, %v326, 0.0
  %346 = vadd.xlane.f32.xlu0 %v345
  %v347 = vpop.xlane.xlu0 %346
  %v348 = vsel %vm341, %v327, 0.0
  %349 = vadd.xlane.f32.xlu0 %v348
  %v350 = vpop.xlane.xlu0 %349
  %v351 = vsel %vm341, %v328, 0.0
  %352 = vadd.xlane.f32.xlu0 %v351
  %v353 = vpop.xlane.xlu0 %352
  %v354 = vsel %vm341, %v329, 0.0
  %355 = vadd.xlane.f32.xlu0 %v354
  %v356 = vpop.xlane.xlu0 %355
  %v357 = vsel %vm341, %v330, 0.0
  %358 = vadd.xlane.f32.xlu0 %v357
  %v359 = vpop.xlane.xlu0 %358
  %v360 = vsel %vm341, %v331, 0.0
  %361 = vadd.xlane.f32.xlu0 %v360
  %v362 = vpop.xlane.xlu0 %361
  %v363 = vsel %vm341, %v332, 0.0
  %364 = vadd.xlane.f32.xlu0 %v363
  %v365 = vpop.xlane.xlu0 %364
  %v366 = vsel %vm341, %v333, 0.0
  %367 = vadd.xlane.f32.xlu0 %v366
  %v368 = vpop.xlane.xlu0 %367
  %v369 = vsel %vm341, %v334, 0.0
  %370 = vadd.xlane.f32.xlu0 %v369
  %v371 = vpop.xlane.xlu0 %370
  %v372 = vsel %vm341, %v335, 0.0
  %373 = vadd.xlane.f32.xlu0 %v372
  %v374 = vpop.xlane.xlu0 %373
  %v375 = vsel %vm341, %v336, 0.0
  %376 = vadd.xlane.f32.xlu0 %v375
  %v377 = vpop.xlane.xlu0 %376
  %v378 = vsel %vm341, %v337, 0.0
  %379 = vadd.xlane.f32.xlu0 %v378
  %v380 = vpop.xlane.xlu0 %379
  %v381 = vsel %vm341, %v338, 0.0
  %382 = vadd.xlane.f32.xlu0 %v381
  %v383 = vpop.xlane.xlu0 %382
  %v384 = vsel %vm341, %v339, 0.0
  %385 = vadd.xlane.f32.xlu0 %v384
  %v386 = vpop.xlane.xlu0 %385
  %v387 = vsel %vm341, %v340, 0.0
  %388 = vadd.xlane.f32.xlu0 %v387
  %v389 = vpop.xlane.xlu0 %388
  %391 = vset.pattern.permute.xlu0 0
  %392 = vperm.xlu0 %391, %v56
  %v393 = vpop.permute.xlu0 %392
  %v395 = vperm.slane %v393, 0
  %v396 = vadd.f32 %v344, %v395
  %v397 = vadd.f32 %v347, %v395
  %v398 = vadd.f32 %v350, %v395
  %v399 = vadd.f32 %v353, %v395
  %v400 = vadd.f32 %v356, %v395
  %v401 = vadd.f32 %v359, %v395
  %v402 = vadd.f32 %v362, %v395
  %v403 = vadd.f32 %v365, %v395
  %v404 = vadd.f32 %v368, %v395
  %v405 = vadd.f32 %v371, %v395
  %v406 = vadd.f32 %v374, %v395
  %v407 = vadd.f32 %v377, %v395
  %v408 = vadd.f32 %v380, %v395
  %v409 = vadd.f32 %v383, %v395
  %v410 = vadd.f32 %v386, %v395
  %v411 = vadd.f32 %v389, %v395
  %v428 = vlaneseq
  %v429 = vand.u32 %v428, 127
  %v430 = vperm.slane %v396, %v429
  %v431 = vadd.s32 %v429, 4294967288
  %v432 = vperm.slane %v397, %v431
  %vm433 = vcmask 130112
  %v434 = vsel %vm433, %v432, %v430
  %v435 = vadd.s32 %v429, 4294967280
  %v436 = vperm.slane %v398, %v435
  %vm437 = vcmask 195712
  %v438 = vsel %vm437, %v436, %v434
  %v439 = vadd.s32 %v429, 4294967272
  %v440 = vperm.slane %v399, %v439
  %vm441 = vcmask 261312
  %v442 = vsel %vm441, %v440, %v438
  %v443 = vadd.s32 %v429, 4294967264
  %v444 = vperm.slane %v400, %v443
  %vm445 = vcmask 326912
  %v446 = vsel %vm445, %v444, %v442
  %v447 = vadd.s32 %v429, 4294967256
  %v448 = vperm.slane %v401, %v447
  %vm449 = vcmask 392512
  %v450 = vsel %vm449, %v448, %v446
  %v451 = vadd.s32 %v429, 4294967248
  %v452 = vperm.slane %v402, %v451
  %vm453 = vcmask 458112
  %v454 = vsel %vm453, %v452, %v450
  %v455 = vadd.s32 %v429, 4294967240
  %v456 = vperm.slane %v403, %v455
  %vm457 = vcmask 523712
  %v458 = vsel %vm457, %v456, %v454
  %v459 = vadd.s32 %v429, 4294967232
  %v460 = vperm.slane %v404, %v459
  %vm461 = vcmask 589312
  %v462 = vsel %vm461, %v460, %v458
  %v463 = vadd.s32 %v429, 4294967224
  %v464 = vperm.slane %v405, %v463
  %vm465 = vcmask 654912
  %v466 = vsel %vm465, %v464, %v462
  %v467 = vadd.s32 %v429, 4294967216
  %v468 = vperm.slane %v406, %v467
  %vm469 = vcmask 720512
  %v470 = vsel %vm469, %v468, %v466
  %v471 = vadd.s32 %v429, 4294967208
  %v472 = vperm.slane %v407, %v471
  %vm473 = vcmask 786112
  %v474 = vsel %vm473, %v472, %v470
  %v475 = vadd.s32 %v429, 4294967200
  %v476 = vperm.slane %v408, %v475
  %vm477 = vcmask 851712
  %v478 = vsel %vm477, %v476, %v474
  %v479 = vadd.s32 %v429, 4294967192
  %v480 = vperm.slane %v409, %v479
  %vm481 = vcmask 917312
  %v482 = vsel %vm481, %v480, %v478
  %v483 = vadd.s32 %v429, 4294967184
  %v484 = vperm.slane %v410, %v483
  %vm485 = vcmask 982912
  %v486 = vsel %vm485, %v484, %v482
  %v487 = vadd.s32 %v429, 4294967176
  %v488 = vperm.slane %v411, %v487
  %vm489 = vcmask 1048512
  %v490 = vsel %vm489, %v488, %v486
  %492 = vst [vmem:[%s7] sm:$0x1] %v490
  // Predicated region
  $region30: #{intermediate_output_forward.1} parent=0 // pred_check
    _
  $region31: #{intermediate_output_forward.1} parent=0 // pred_check_branch
    %494 = sbr.rel (0) target = $region33
  $region32: #{intermediate_output_forward.1} parent=0 // pred_region
    _
  $region33: #{intermediate_output_forward.1} parent=0 // pred_fallthru
    _
  // Predicated region
  $region34: #{intermediate_output_forward.1} parent=0 // pred_check
    _
  $region35: #{intermediate_output_forward.1} parent=0 // pred_check_branch
    %496 = sbr.rel (0) target = $region37
  $region36: #{intermediate_output_forward.1} parent=0 // pred_region
    _
  $region37: #{intermediate_output_forward.1} parent=0 // pred_fallthru
    _

</llo_original>
